<compile_context>
chip_gen: v7x
topology: tpu7x:2x2x1
jax: 0.10.0
libtpu: 0.0.40
codegen_flags: <defaults>
</compile_context>

<pallas_src>
import functools

import jax
import jax.numpy as jnp
import numpy as np
from jax import lax
from jax.experimental import pallas as pl
from jax.experimental.pallas import tpu as pltpu

LOG2 = float(np.log(2.0))


def _round_up(v, m):
    return (v + m - 1) // m * m


def _pad_to(a, shape, value=0):
    """Pad `a` up to `shape`; no-op (no HBM copy) when already aligned."""
    if tuple(a.shape) == tuple(shape):
        return a
    pads = [(0, t - s) for s, t in zip(a.shape, shape)]
    return jnp.pad(a, pads, constant_values=value)


def _cfconv_kernel(
    fij_ref,      # (TILE_P, n_basis_pad)    f32, pairs of this atom tile
    nbh_ref,      # (TILE_P, 1)              int32, -1 == masked / padded pair
    y_ref,        # (N_a_y_pad, 2*F_pad)     bf16, [y_hi | y_lo]
    w1_ref,       # (n_basis_pad, F_pad)     f32
    b1_ref,       # (1, F_pad)
    w2_ref,       # (F_pad, F_pad)
    b2_ref,       # (1, F_pad)
    w_out_ref,    # (F_pad, n_out_pad)
    b_out_ref,    # (1, n_out_pad)
    out_ref,      # (TILE_A, n_out_pad)      f32
    *,
    tile_a: int,
    n_nbh_pad: int,
    f_pad: int,
    chunk: int,
    num_chunks: int,
):
    tile_p = tile_a * n_nbh_pad

    # ---- filter network: W = Dense(ssp(Dense(f_ij))) --------------------------
    # Kept in f32 for fidelity with the PyTorch module; the elementwise math
    # (bias add, softplus) must stay f32 anyway on v5e (no bf16 VPU/EUP).
    h = jnp.dot(fij_ref[...], w1_ref[...], preferred_element_type=jnp.float32)
    h = h + b1_ref[...]
    h = jax.nn.softplus(h) - LOG2                       # shifted softplus
    W = jnp.dot(h, w2_ref[...], preferred_element_type=jnp.float32)
    W = W + b2_ref[...]                                 # (TILE_P, F_pad)
    # cutoff_network is None (module default) -> no cutoff modulation.

    # ---- gather y at neighbor indices: chunked bf16 one-hot matmul ------------
    # One (TILE_P, CHUNK) iota is built once and re-used; per chunk only the
    # compare + bf16 convert runs on the VPU.  The bf16 one-hot rows ({0,1},
    # exactly representable) select bf16 hi/lo halves of y with f32
    # accumulation; masked/padded pairs (index -1) select nothing -> exact 0.
    nbh = nbh_ref[...]                                                  # (TILE_P, 1)
    iota = lax.broadcasted_iota(jnp.int32, (tile_p, chunk), 1)          # (TILE_P, CHUNK)

    def gather_chunk(c, acc):
        base = pl.multiple_of(c * chunk, chunk)
        onehot = (iota == (nbh - c * chunk)).astype(jnp.bfloat16)       # (TILE_P, CHUNK)
        y_blk = y_ref[pl.ds(base, chunk), :]                            # (CHUNK, 2*F_pad)
        return acc + jnp.dot(onehot, y_blk, preferred_element_type=jnp.float32)

    acc0 = jnp.zeros((tile_p, 2 * f_pad), jnp.float32)
    y_hl = lax.fori_loop(0, num_chunks, gather_chunk, acc0)             # (TILE_P, 2*F_pad)
    y_g = y_hl[:, :f_pad] + y_hl[:, f_pad:]                             # hi + lo, f32

    # ---- continuous-filter product ---------------------------------------------
    yW = y_g * W                                                        # (TILE_P, F_pad)

    # ---- aggregate over neighbors: tile-aligned reshape + sum (VPU/XLU) --------
    # normalize_filter=False -> sum aggregation.
    agg = yW.reshape(tile_a, n_nbh_pad, f_pad).sum(axis=1)              # (TILE_A, F_pad)

    # ---- f2out: affine (activation=None) ----------------------------------------
    out = jnp.dot(agg, w_out_ref[...], preferred_element_type=jnp.float32)
    out_ref[...] = out + b_out_ref[...]


def cfconv_pallas(x, f_ij, neighbors, pairwise_mask, params,
                  *, target_pairs_per_tile=None, vmem_limit_bytes=None, y_chunk=512):
    N_b, N_a, n_in = x.shape
    _, _, N_nbh, n_basis = f_ij.shape
    F = params["w_in2f"].shape[1]
    n_out = params["w_out"].shape[1]
    f32 = jnp.float32
    bf16 = jnp.bfloat16

    # ---- per-generation sizing -------------------------------------------------
    try:
        phys_vmem = int(pltpu.get_tpu_info().vmem_capacity_bytes)
    except Exception:
        phys_vmem = 64 * 1024 * 1024            # conservative (v7x per-core) fallback
    if vmem_limit_bytes is None:
        vmem_limit_bytes = min(100 * 2**20, max(phys_vmem - 16 * 2**20, 32 * 2**20))
    if target_pairs_per_tile is None:
        # v5e/v6e (128 MiB VMEM): bigger tiles amortize per-step overhead;
        # v7x (64 MiB): keep ~2K pairs.  Budget includes the (TILE_P, 1) int32
        # neighbor block's 128-lane VMEM padding (~TILE_P*512 B per buffer).
        target_pairs_per_tile = 4096 if vmem_limit_bytes >= 64 * 2**20 else 2048

    # ---- padding / tiling (lane dims -> 128, sublane dims -> 8) -----------------
    n_basis_pad = _round_up(n_basis, 128)
    F_pad = _round_up(F, 128)
    n_out_pad = _round_up(n_out, 128)
    n_nbh_pad = _round_up(N_nbh, 8)

    tile_a = max(8, (target_pairs_per_tile // n_nbh_pad) // 8 * 8)
    tile_a = min(tile_a, _round_up(N_a, 8))
    n_atoms_pad = _round_up(N_a, tile_a)        # atom padding for pairs / output
    num_tiles = n_atoms_pad // tile_a
    tile_p = tile_a * n_nbh_pad
    P_pad = n_atoms_pad * n_nbh_pad

    # y (gather source) is padded *independently* to a multiple of the gather
    # chunk; its padded rows are never selected (neighbor indices < N_a), so the
    # two paddings need not match and the one-hot temp stays (TILE_P, CHUNK).
    chunk = min(_round_up(y_chunk, 8), _round_up(N_a, 8))
    n_a_y_pad = _round_up(N_a, chunk)
    num_chunks = n_a_y_pad // chunk

    # ---- wrapper-side: y = x @ W_in2f (in2f, no bias), bf16 hi/lo split ---------
    y = jnp.matmul(x.astype(f32), params["w_in2f"].astype(f32))        # (N_b, N_a, F)
    y_hi = y.astype(bf16)
    y_lo = (y - y_hi.astype(f32)).astype(bf16)
    y_hl = jnp.zeros((N_b, n_a_y_pad, 2 * F_pad), bf16)
    y_hl = y_hl.at[:, :N_a, :F].set(y_hi)
    y_hl = y_hl.at[:, :N_a, F_pad:F_pad + F].set(y_lo)

    # ---- f_ij / neighbors layout plumbing (pad only if needed) ------------------
    fij_p = _pad_to(f_ij.astype(f32), (N_b, n_atoms_pad, n_nbh_pad, n_basis_pad))
    fij_flat = fij_p.reshape(N_b, P_pad, n_basis_pad)

    # Fold the (binary) pairwise mask into the neighbor indices: masked or
    # padded pairs get index -1 -> zero one-hot row inside the kernel.
    nbh_masked = jnp.where(pairwise_mask > 0, neighbors.astype(jnp.int32), -1)
    nbh_p = _pad_to(nbh_masked, (N_b, n_atoms_pad, n_nbh_pad), value=-1)
    nbh_flat = nbh_p.reshape(N_b, P_pad, 1)

    def pad2(w, r, c):
        return _pad_to(w.astype(f32), (r, c))

    w1 = pad2(params["w1"], n_basis_pad, F_pad)
    b1 = pad2(params["b1"], 1, F_pad)
    w2 = pad2(params["w2"], F_pad, F_pad)
    b2 = pad2(params["b2"], 1, F_pad)
    w_out = pad2(params["w_out"], F_pad, n_out_pad)
    b_out = pad2(params["b_out"], 1, n_out_pad)

    kernel = functools.partial(
        _cfconv_kernel,
        tile_a=tile_a, n_nbh_pad=n_nbh_pad, f_pad=F_pad,
        chunk=chunk, num_chunks=num_chunks,
    )

    # Weights: constant block index -> DMA'd once, resident across the grid.
    const = lambda shape: pl.BlockSpec(shape, lambda b, t: (0,) * len(shape))

    flops = int(
        2 * N_b * P_pad * (n_basis_pad * F_pad + F_pad * F_pad + n_a_y_pad * 2 * F_pad)
        + 2 * N_b * n_atoms_pad * F_pad * n_out_pad
    )
    transcendentals = int(2 * N_b * P_pad * F_pad)      # softplus: exp + log1p
    bytes_accessed = int(
        fij_flat.size * 4 + nbh_flat.size * 4 + y_hl.size * 2
        + (w1.size + b1.size + w2.size + b2.size + w_out.size + b_out.size) * 4
        + N_b * n_atoms_pad * n_out_pad * 4
    )

    out_p = pl.pallas_call(
        kernel,
        out_shape=jax.ShapeDtypeStruct((N_b, n_atoms_pad, n_out_pad), f32),
        grid=(N_b, num_tiles),
        in_specs=[
            # Leading None == pl.Squeezed(): kernel refs are 2-D.
            pl.BlockSpec((None, tile_p, n_basis_pad), lambda b, t: (b, t, 0)),
            pl.BlockSpec((None, tile_p, 1), lambda b, t: (b, t, 0)),
            pl.BlockSpec((None, n_a_y_pad, 2 * F_pad), lambda b, t: (b, 0, 0)),
            const((n_basis_pad, F_pad)),
            const((1, F_pad)),
            const((F_pad, F_pad)),
            const((1, F_pad)),
            const((F_pad, n_out_pad)),
            const((1, n_out_pad)),
        ],
        out_specs=pl.BlockSpec((None, tile_a, n_out_pad), lambda b, t: (b, t, 0)),
        compiler_params=pltpu.CompilerParams(
            dimension_semantics=("parallel", "parallel"),
            vmem_limit_bytes=int(vmem_limit_bytes),
        ),
        cost_estimate=pl.CostEstimate(
            flops=flops, transcendentals=transcendentals, bytes_accessed=bytes_accessed),
    )(fij_flat, nbh_flat, y_hl, w1, b1, w2, b2, w_out, b_out)

    return out_p[:, :N_a, :n_out]


def cfconv_reference(x, f_ij, neighbors, pairwise_mask, params):
    """Pure-JAX f32 reference mirroring the PyTorch forward."""
    N_b, N_a, N_nbh, _ = f_ij.shape
    y = x @ params["w_in2f"]                              # in2f (no bias)
    h = f_ij @ params["w1"] + params["b1"][0]
    h = jax.nn.softplus(h) - LOG2
    W = h @ params["w2"] + params["b2"][0]                # (B, Na, Nn, F)
    nbh = neighbors.reshape(N_b, N_a * N_nbh, 1)
    y_g = jnp.take_along_axis(y, nbh, axis=1)             # torch.gather equiv
    y_g = y_g.reshape(N_b, N_a, N_nbh, -1)
    y_g = y_g * W
    agg = (y_g * pairwise_mask[..., None]).sum(axis=2)    # Aggregate(axis=2, mean=False)
    return agg @ params["w_out"] + params["b_out"][0]     # f2out (activation=None)


if __name__ == "__main__":
    # small deterministic problem
    N_b, N_a, N_nbh = 2, 8, 7
    n_in, n_filters, n_out, n_basis = 32, 16, 32, 16

    key = jax.random.PRNGKey(0)
    ks = jax.random.split(key, 10)

    x = jax.random.normal(ks[0], (N_b, N_a, n_in), jnp.float32)
    r_ij = jax.random.uniform(ks[1], (N_b, N_a, N_nbh), jnp.float32, 0.5, 5.0)
    # expanded distances in a basis (f_ij); if None the module would use r_ij[..., None]
    f_ij = jax.random.normal(ks[2], (N_b, N_a, N_nbh, n_basis), jnp.float32)
    # neighbor indices: each atom's other atoms
    base = np.arange(N_a)[:, None] + np.arange(1, N_nbh + 1)[None, :]
    neighbors = jnp.asarray(
        np.broadcast_to((base % N_a)[None], (N_b, N_a, N_nbh)), jnp.int32
    )
    pairwise_mask = (
        jax.random.uniform(ks[3], (N_b, N_a, N_nbh)) > 0.2
    ).astype(jnp.float32)

    def glorot(k, shape):
        fan_in, fan_out = shape
        lim = np.sqrt(6.0 / (fan_in + fan_out))
        return jax.random.uniform(k, shape, jnp.float32, -lim, lim)

    params = {
        "w_in2f": glorot(ks[4], (n_in, n_filters)),
        "w1": glorot(ks[5], (n_basis, n_filters)),
        "b1": jax.random.normal(ks[6], (1, n_filters), jnp.float32) * 0.1,
        "w2": glorot(ks[7], (n_filters, n_filters)),
        "b2": jnp.zeros((1, n_filters), jnp.float32),
        "w_out": glorot(ks[8], (n_filters, n_out)),
        "b_out": jax.random.normal(ks[9], (1, n_out), jnp.float32) * 0.1,
    }

    cfconv = jax.jit(cfconv_pallas)
    out = cfconv(x, f_ij, neighbors, pairwise_mask, params)
    out = jax.block_until_ready(out)

    ref = cfconv_reference(x, f_ij, neighbors, pairwise_mask, params)
    # Tolerance covers the bf16 hi/lo gather split (rel. error ~2^-18, a couple
    # of f32 roundings) plus tiling-order differences vs. the XLA reference.
    np.testing.assert_allclose(np.asarray(out), np.asarray(ref), rtol=2e-4, atol=2e-4)

    print("KERNEL_OK")
</pallas_src>

<mosaic_0001>
module attributes {stable_mosaic.version = 11 : i64} {
  func.func @_cfconv_kernel(%arg0: i32, %arg1: i32, %arg2: memref<1x64x128xf32, #tpu.memory_space<vmem>>, %arg3: memref<1x64x1xi32, #tpu.memory_space<vmem>>, %arg4: memref<1x8x256xbf16, #tpu.memory_space<vmem>>, %arg5: memref<128x128xf32, #tpu.memory_space<vmem>>, %arg6: memref<1x128xf32, #tpu.memory_space<vmem>>, %arg7: memref<128x128xf32, #tpu.memory_space<vmem>>, %arg8: memref<1x128xf32, #tpu.memory_space<vmem>>, %arg9: memref<128x128xf32, #tpu.memory_space<vmem>>, %arg10: memref<1x128xf32, #tpu.memory_space<vmem>>, %arg11: memref<1x8x128xf32, #tpu.memory_space<vmem>>) attributes {dimension_semantics = [#tpu.dimension_semantics<parallel>, #tpu.dimension_semantics<parallel>], iteration_bounds = array<i64: 2, 1>, scalar_prefetch = 0 : i64, scratch_operands = 0 : i64, tpu.core_type = #tpu.core_type<tc>, window_params = [{transform_indices = @transform_0, window_bounds = array<i64: 1, 64, 128>}, {transform_indices = @transform_1, window_bounds = array<i64: 1, 64, 1>}, {transform_indices = @transform_2, window_bounds = array<i64: 1, 8, 256>}, {pipeline_mode = #tpu.pipeline_mode<synchronous>, transform_indices = @transform_3, window_bounds = array<i64: 128, 128>}, {pipeline_mode = #tpu.pipeline_mode<synchronous>, transform_indices = @transform_4, window_bounds = array<i64: 1, 128>}, {pipeline_mode = #tpu.pipeline_mode<synchronous>, transform_indices = @transform_5, window_bounds = array<i64: 128, 128>}, {pipeline_mode = #tpu.pipeline_mode<synchronous>, transform_indices = @transform_6, window_bounds = array<i64: 1, 128>}, {pipeline_mode = #tpu.pipeline_mode<synchronous>, transform_indices = @transform_7, window_bounds = array<i64: 128, 128>}, {pipeline_mode = #tpu.pipeline_mode<synchronous>, transform_indices = @transform_8, window_bounds = array<i64: 1, 128>}, {transform_indices = @transform_9, window_bounds = array<i64: 1, 8, 128>}]} {
    %c0 = arith.constant 0 : index
    %c0_0 = arith.constant 0 : index
    %c0_1 = arith.constant 0 : index
    %0 = vector.load %arg2[%c0, %c0_0, %c0_1] : memref<1x64x128xf32, #tpu.memory_space<vmem>>, vector<1x64x128xf32>
    %1 = vector.shape_cast %0 : vector<1x64x128xf32> to vector<64x128xf32>
    %c0_2 = arith.constant 0 : index
    %c0_3 = arith.constant 0 : index
    %2 = vector.load %arg5[%c0_2, %c0_3] : memref<128x128xf32, #tpu.memory_space<vmem>>, vector<128x128xf32>
    %cst = arith.constant dense<0.000000e+00> : vector<64x128xf32>
    %3 = tpu.matmul %1, %2, %cst {dimension_numbers = #tpu.dot_dimension_numbers<[1], [0], [0], [1], [0, 0, 1, 1], [], []>} : vector<64x128xf32>, vector<128x128xf32>, vector<64x128xf32> -> vector<64x128xf32>
    %c0_4 = arith.constant 0 : index
    %c0_5 = arith.constant 0 : index
    %4 = vector.load %arg6[%c0_4, %c0_5] : memref<1x128xf32, #tpu.memory_space<vmem>>, vector<1x128xf32>
    %5 = vector.broadcast %4 : vector<1x128xf32> to vector<64x128xf32>
    %6 = arith.addf %3, %5 : vector<64x128xf32>
    %cst_6 = arith.constant 0.000000e+00 : f32
    %7 = vector.broadcast %cst_6 : f32 to vector<64x128xf32>
    %8 = arith.maximumf %6, %7 : vector<64x128xf32>
    %9 = vector.broadcast %cst_6 : f32 to vector<64x128xf32>
    %10 = arith.subf %6, %9 : vector<64x128xf32>
    %11 = arith.cmpf one, %10, %10 : vector<64x128xf32>
    %12 = vector.broadcast %cst_6 : f32 to vector<64x128xf32>
    %13 = arith.addf %6, %12 : vector<64x128xf32>
    %14 = math.absf %10 : vector<64x128xf32>
    %cst_7 = arith.constant 0.000000e+00 : f32
    %15 = vector.broadcast %cst_7 : f32 to vector<64x128xf32>
    %16 = arith.subf %15, %14 : vector<64x128xf32>
    %17 = math.exp %16 : vector<64x128xf32>
    %18 = math.log1p %17 : vector<64x128xf32>
    %19 = arith.addf %8, %18 : vector<64x128xf32>
    %20 = arith.select %11, %13, %19 : vector<64x128xi1>, vector<64x128xf32>
    %cst_8 = arith.constant 0.693147182 : f32
    %21 = vector.broadcast %cst_8 : f32 to vector<64x128xf32>
    %22 = arith.subf %20, %21 : vector<64x128xf32>
    %c0_9 = arith.constant 0 : index
    %c0_10 = arith.constant 0 : index
    %23 = vector.load %arg7[%c0_9, %c0_10] : memref<128x128xf32, #tpu.memory_space<vmem>>, vector<128x128xf32>
    %cst_11 = arith.constant dense<0.000000e+00> : vector<64x128xf32>
    %24 = tpu.matmul %22, %23, %cst_11 {dimension_numbers = #tpu.dot_dimension_numbers<[1], [0], [0], [1], [0, 0, 1, 1], [], []>} : vector<64x128xf32>, vector<128x128xf32>, vector<64x128xf32> -> vector<64x128xf32>
    %c0_12 = arith.constant 0 : index
    %c0_13 = arith.constant 0 : index
    %25 = vector.load %arg8[%c0_12, %c0_13] : memref<1x128xf32, #tpu.memory_space<vmem>>, vector<1x128xf32>
    %26 = vector.broadcast %25 : vector<1x128xf32> to vector<64x128xf32>
    %27 = arith.addf %24, %26 : vector<64x128xf32>
    %c0_14 = arith.constant 0 : index
    %c0_15 = arith.constant 0 : index
    %c0_16 = arith.constant 0 : index
    %28 = vector.load %arg3[%c0_14, %c0_15, %c0_16] : memref<1x64x1xi32, #tpu.memory_space<vmem>>, vector<1x64x1xi32>
    %29 = vector.shape_cast %28 : vector<1x64x1xi32> to vector<64x1xi32>
    %30 = tpu.iota {dimensions = array<i32: 1>} : vector<64x8xi32>
    %cst_17 = arith.constant 0.000000e+00 : f32
    %31 = vector.broadcast %cst_17 : f32 to vector<64x256xf32>
    %c0_i32 = arith.constant 0 : i32
    %c8_i32 = arith.constant 8 : i32
    %32 = arith.muli %c0_i32, %c8_i32 : i32
    %33 = tpu.assume_multiple %32, 8 : i32
    %c8_i32_18 = arith.constant 8 : i32
    %34 = arith.muli %c0_i32, %c8_i32_18 : i32
    %35 = vector.broadcast %34 : i32 to vector<64x1xi32>
    %36 = arith.subi %29, %35 : vector<64x1xi32>
    %37 = vector.broadcast %36 : vector<64x1xi32> to vector<64x8xi32>
    %38 = arith.cmpi eq, %30, %37 : vector<64x8xi32>
    %39 = arith.extui %38 : vector<64x8xi1> to vector<64x8xi32>
    %40 = arith.sitofp %39 : vector<64x8xi32> to vector<64x8xf32>
    %41 = arith.truncf %40 : vector<64x8xf32> to vector<64x8xbf16>
    %c0_19 = arith.constant 0 : index
    %42 = arith.index_cast %33 : i32 to index
    %c0_20 = arith.constant 0 : index
    %43 = vector.load %arg4[%c0_19, %42, %c0_20] : memref<1x8x256xbf16, #tpu.memory_space<vmem>>, vector<1x8x256xbf16>
    %44 = vector.shape_cast %43 : vector<1x8x256xbf16> to vector<8x256xbf16>
    %cst_21 = arith.constant dense<0.000000e+00> : vector<64x256xf32>
    %45 = tpu.matmul %41, %44, %cst_21 {dimension_numbers = #tpu.dot_dimension_numbers<[1], [0], [0], [1], [0, 0, 1, 1], [], []>} : vector<64x8xbf16>, vector<8x256xbf16>, vector<64x256xf32> -> vector<64x256xf32>
    %46 = arith.addf %31, %45 : vector<64x256xf32>
    %c1_i32 = arith.constant 1 : i32
    %47 = vector.extract_strided_slice %46 {offsets = [0, 0], sizes = [64, 128], strides = [1, 1]} : vector<64x256xf32> to vector<64x128xf32>
    %48 = vector.extract_strided_slice %46 {offsets = [0, 128], sizes = [64, 128], strides = [1, 1]} : vector<64x256xf32> to vector<64x128xf32>
    %49 = arith.addf %47, %48 : vector<64x128xf32>
    %50 = arith.mulf %49, %27 : vector<64x128xf32>
    %51 = vector.shape_cast %50 : vector<64x128xf32> to vector<8x8x128xf32>
    %cst_22 = arith.constant dense<0.000000e+00> : vector<8x128xf32>
    %52 = vector.multi_reduction <add>, %51, %cst_22 [1] : vector<8x8x128xf32> to vector<8x128xf32>
    %c0_23 = arith.constant 0 : index
    %c0_24 = arith.constant 0 : index
    %53 = vector.load %arg9[%c0_23, %c0_24] : memref<128x128xf32, #tpu.memory_space<vmem>>, vector<128x128xf32>
    %cst_25 = arith.constant dense<0.000000e+00> : vector<8x128xf32>
    %54 = tpu.matmul %52, %53, %cst_25 {dimension_numbers = #tpu.dot_dimension_numbers<[1], [0], [0], [1], [0, 0, 1, 1], [], []>} : vector<8x128xf32>, vector<128x128xf32>, vector<8x128xf32> -> vector<8x128xf32>
    %c0_26 = arith.constant 0 : index
    %c0_27 = arith.constant 0 : index
    %55 = vector.load %arg10[%c0_26, %c0_27] : memref<1x128xf32, #tpu.memory_space<vmem>>, vector<1x128xf32>
    %56 = vector.broadcast %55 : vector<1x128xf32> to vector<8x128xf32>
    %57 = arith.addf %54, %56 : vector<8x128xf32>
    %c0_28 = arith.constant 0 : index
    %c0_29 = arith.constant 0 : index
    %c0_30 = arith.constant 0 : index
    %58 = vector.load %arg11[%c0_28, %c0_29, %c0_30] : memref<1x8x128xf32, #tpu.memory_space<vmem>>, vector<1x8x128xf32>
    %59 = vector.shape_cast %58 : vector<1x8x128xf32> to vector<8x128xf32>
    %60 = vector.shape_cast %57 : vector<8x128xf32> to vector<1x8x128xf32>
    tpu.vector_store %arg11[%c0_28, %c0_29, %c0_30], %60 {strides = array<i32>} : memref<1x8x128xf32, #tpu.memory_space<vmem>>, vector<1x8x128xf32>,
    return
  }
  func.func @transform_0(%arg0: i32, %arg1: i32) -> (i32, i32, i32) {
    %c0_i32 = arith.constant 0 : i32
    %c0_i32_0 = arith.constant 0 : i32
    return %arg0, %arg1, %c0_i32 : i32, i32, i32
  }
  func.func @transform_1(%arg0: i32, %arg1: i32) -> (i32, i32, i32) {
    %c0_i32 = arith.constant 0 : i32
    %c0_i32_0 = arith.constant 0 : i32
    return %arg0, %arg1, %c0_i32 : i32, i32, i32
  }
  func.func @transform_2(%arg0: i32, %arg1: i32) -> (i32, i32, i32) {
    %c0_i32 = arith.constant 0 : i32
    %c0_i32_0 = arith.constant 0 : i32
    %c0_i32_1 = arith.constant 0 : i32
    return %arg0, %c0_i32, %c0_i32_0 : i32, i32, i32
  }
  func.func @transform_3(%arg0: i32, %arg1: i32) -> (i32, i32) {
    %c0_i32 = arith.constant 0 : i32
    %c0_i32_0 = arith.constant 0 : i32
    %c0_i32_1 = arith.constant 0 : i32
    return %c0_i32, %c0_i32_0 : i32, i32
  }
  func.func @transform_4(%arg0: i32, %arg1: i32) -> (i32, i32) {
    %c0_i32 = arith.constant 0 : i32
    %c0_i32_0 = arith.constant 0 : i32
    %c0_i32_1 = arith.constant 0 : i32
    return %c0_i32, %c0_i32_0 : i32, i32
  }
  func.func @transform_5(%arg0: i32, %arg1: i32) -> (i32, i32) {
    %c0_i32 = arith.constant 0 : i32
    %c0_i32_0 = arith.constant 0 : i32
    %c0_i32_1 = arith.constant 0 : i32
    return %c0_i32, %c0_i32_0 : i32, i32
  }
  func.func @transform_6(%arg0: i32, %arg1: i32) -> (i32, i32) {
    %c0_i32 = arith.constant 0 : i32
    %c0_i32_0 = arith.constant 0 : i32
    %c0_i32_1 = arith.constant 0 : i32
    return %c0_i32, %c0_i32_0 : i32, i32
  }
  func.func @transform_7(%arg0: i32, %arg1: i32) -> (i32, i32) {
    %c0_i32 = arith.constant 0 : i32
    %c0_i32_0 = arith.constant 0 : i32
    %c0_i32_1 = arith.constant 0 : i32
    return %c0_i32, %c0_i32_0 : i32, i32
  }
  func.func @transform_8(%arg0: i32, %arg1: i32) -> (i32, i32) {
    %c0_i32 = arith.constant 0 : i32
    %c0_i32_0 = arith.constant 0 : i32
    %c0_i32_1 = arith.constant 0 : i32
    return %c0_i32, %c0_i32_0 : i32, i32
  }
  func.func @transform_9(%arg0: i32, %arg1: i32) -> (i32, i32, i32) {
    %c0_i32 = arith.constant 0 : i32
    %c0_i32_0 = arith.constant 0 : i32
    return %arg0, %arg1, %c0_i32 : i32, i32, i32
  }
}

</mosaic_0001>

<llo_original>
// kernel: cfconv_pallas.1
$region0: #{cfconv_pallas.1}
  #allocation0 [shape = 'u32[]', space=smem, size = 0x4, offset = 0x4, fixed_abs, tag = 'smem constant byte address 0x4 - core index']
  #allocation1 [shape = 'u32[144,128]{1,0:T(1,128)}', space=vmem, size = 0x12000, scoped, tag = 'internal scratch']
  %s0 = inlined_call_operand.vmem [shape: f32[2,64,128], index: 0, kind: input, shape index: {}]
  %s1 = inlined_call_operand.vmem [shape: s32[2,64,1], index: 1, kind: input, shape index: {}]
  %s2 = inlined_call_operand.vmem [shape: bf16[2,8,256], index: 2, kind: input, shape index: {}]
  %s3 = inlined_call_operand.vmem [shape: f32[128,128], index: 3, kind: input, shape index: {}]
  %s4 = inlined_call_operand.vmem [shape: f32[1,128], index: 4, kind: input, shape index: {}]
  %s5 = inlined_call_operand.vmem [shape: f32[128,128], index: 5, kind: input, shape index: {}]
  %s6 = inlined_call_operand.vmem [shape: f32[1,128], index: 6, kind: input, shape index: {}]
  %s7 = inlined_call_operand.vmem [shape: f32[128,128], index: 7, kind: input, shape index: {}]
  %s8 = inlined_call_operand.vmem [shape: f32[1,128], index: 8, kind: input, shape index: {}]
  %s9 = inlined_call_operand.hbm [shape: f32[2,8,128], index: 9, kind: output, shape index: {}]
  %s10 = sld [smem:[#allocation0]]
  $region69: #{cfconv_pallas.1} parent=0
    _
  %s12 = ssub.s32 1, %s10
  %s13 = scalar_select 0, %s12, %s10
  $region1: #{cfconv_pallas.1} parent=0
    #allocation2 [shape = 'u8[8192]{0}', space=vmem, size = 0x2000, scoped, tag = 'output window, operand 0']
    #allocation3 [shape = 's32[2]{0}', space=sflag, size = 0x8, scoped, tag = 'scoped memory for cfconv_pallas.1']
    %14 = vsyncpa [#allocation3], 0
    %s15 = scalar_lea.sflag [#allocation3], 1
    %16 = vsyncpa %s15, 0
    loop: start=0, step=1, limit=4
    $region2: #{cfconv_pallas.1} parent=1 // loop_pre_header
      _
    $region3: #{cfconv_pallas.1} parent=1 // loop_header
      %s18 = sphi 0, %s22
      %p19 = scmp.ge.s32.totalorder %s18, 4
      %s25 = sphi 0, %s37
      %s26 = sphi 0, %s33
      %s27 = sphi 0, %s25
      %s28 = sphi 0, %s26
      %s29 = sphi 0, %s27
      %s30 = sphi 0, %s28
      %s42 = sphi 0, %s44
      %s45 = sphi 0, %s42
      %s46 = sphi 0, %s45
      %s62 = sphi 0, %s46
      %s70 = sphi 0, %s72
      %s73 = sphi 0, %s70
      %s74 = sphi 0, %s73
      %s90 = sphi 0, %s74
      %s96 = sphi 0, %s98
      %s99 = sphi 0, %s96
      %s100 = sphi 0, %s99
      %s116 = sphi 0, %s100
      %s120 = sphi 0, %s120
      %s122 = sphi 0, %s120
      %s123 = sphi 0, %s122
      %s137 = sphi 0, %s123
      %s141 = sphi 0, %s141
      %s143 = sphi 0, %s141
      %s144 = sphi 0, %s143
      %s158 = sphi 0, %s144
      %s162 = sphi 0, %s162
      %s164 = sphi 0, %s162
      %s165 = sphi 0, %s164
      %s179 = sphi 0, %s165
      %s183 = sphi 0, %s183
      %s185 = sphi 0, %s183
      %s186 = sphi 0, %s185
      %s200 = sphi 0, %s186
      %s204 = sphi 0, %s204
      %s206 = sphi 0, %s204
      %s207 = sphi 0, %s206
      %s221 = sphi 0, %s207
      %s225 = sphi 0, %s225
      %s227 = sphi 0, %s225
      %s228 = sphi 0, %s227
      %s242 = sphi 0, %s228
      %s250 = sphi 0, %s252
      %s253 = sphi 0, %s250
      %s254 = sphi 0, %s253
      %s270 = sphi 0, %s254
    $region4: #{cfconv_pallas.1} parent=1 // loop_header_branch
      %21 = sbr.rel (%p19) target = $region8
    $region5: #{cfconv_pallas.1} parent=1 // loop_body
      %s23 = ssub.s32 %s18, 1
      %s24 = ssub.s32 %s18, 2
      %s31 = sadd.s32 1, %s26
      %p32 = scmp.ge.s32.totalorder %s31, 1
      %s33 = scalar_select %p32, 0, %s31
      %s34 = sadd.s32 1, %s25
      %s35 = scalar_select %p32, %s34, %s25
      %p36 = scmp.ge.s32.totalorder %s35, 2
      %s37 = scalar_select %p36, 0, %s35
      %s38 = ssub.s32 %s25, %s37
      %s39 = ssub.s32 %s26, %s33
      %s40 = sor.u32 %s38, %s39
      %p41 = scmp.eq.s32.totalorder %s40, 0
      %s43 = sadd.s32 %s42, 1
      %s44 = scalar_select %p41, %s42, %s43
      %p47 = pneg %p41
      %p48 = scmp.eq.s32.totalorder %s18, 1
      %p49 = por %p47, %p48
      %p50 = scmp.ne.s32.totalorder %s42, %s45
      %p51 = scmp.eq.s32.totalorder %s18, 0
      %p52 = por %p50, %p51
      %p53 = scmp.ne.s32.totalorder %s42, %s45
      %p54 = scmp.eq.s32.totalorder %s23, 1
      %p55 = por %p53, %p54
      %p56 = scmp.ne.s32.totalorder %s45, %s46
      %p57 = scmp.eq.s32.totalorder %s23, 0
      %p58 = por %p56, %p57
      %p59 = scmp.ne.s32.totalorder %s45, %s46
      %p60 = scmp.eq.s32.totalorder %s24, 1
      %p61 = por %p59, %p60
      %p63 = scmp.ne.s32.totalorder %s46, %s62
      %p64 = scmp.eq.s32.totalorder %s24, 0
      %p65 = por %p63, %p64
      %s66 = ssub.s32 %s25, %s37
      %s67 = ssub.s32 %s26, %s33
      %s68 = sor.u32 %s66, %s67
      %p69 = scmp.eq.s32.totalorder %s68, 0
      %s71 = sadd.s32 %s70, 1
      %s72 = scalar_select %p69, %s70, %s71
      %p75 = pneg %p69
      %p76 = scmp.eq.s32.totalorder %s18, 1
      %p77 = por %p75, %p76
      %p78 = scmp.ne.s32.totalorder %s70, %s73
      %p79 = scmp.eq.s32.totalorder %s18, 0
      %p80 = por %p78, %p79
      %p81 = scmp.ne.s32.totalorder %s70, %s73
      %p82 = scmp.eq.s32.totalorder %s23, 1
      %p83 = por %p81, %p82
      %p84 = scmp.ne.s32.totalorder %s73, %s74
      %p85 = scmp.eq.s32.totalorder %s23, 0
      %p86 = por %p84, %p85
      %p87 = scmp.ne.s32.totalorder %s73, %s74
      %p88 = scmp.eq.s32.totalorder %s24, 1
      %p89 = por %p87, %p88
      %p91 = scmp.ne.s32.totalorder %s74, %s90
      %p92 = scmp.eq.s32.totalorder %s24, 0
      %p93 = por %p91, %p92
      %s94 = ssub.s32 %s25, %s37
      %p95 = scmp.eq.s32.totalorder %s94, 0
      %s97 = sadd.s32 %s96, 1
      %s98 = scalar_select %p95, %s96, %s97
      %p101 = pneg %p95
      %p102 = scmp.eq.s32.totalorder %s18, 1
      %p103 = por %p101, %p102
      %p104 = scmp.ne.s32.totalorder %s96, %s99
      %p105 = scmp.eq.s32.totalorder %s18, 0
      %p106 = por %p104, %p105
      %p107 = scmp.ne.s32.totalorder %s96, %s99
      %p108 = scmp.eq.s32.totalorder %s23, 1
      %p109 = por %p107, %p108
      %p110 = scmp.ne.s32.totalorder %s99, %s100
      %p111 = scmp.eq.s32.totalorder %s23, 0
      %p112 = por %p110, %p111
      %p113 = scmp.ne.s32.totalorder %s99, %s100
      %p114 = scmp.eq.s32.totalorder %s24, 1
      %p115 = por %p113, %p114
      %p117 = scmp.ne.s32.totalorder %s100, %s116
      %p118 = scmp.eq.s32.totalorder %s24, 0
      %p119 = por %p117, %p118
      %s121 = sadd.s32 %s120, 1
      %p124 = scmp.eq.s32.totalorder %s18, 1
      %p125 = scmp.ne.s32.totalorder %s120, %s122
      %p126 = scmp.eq.s32.totalorder %s18, 0
      %p127 = por %p125, %p126
      %p128 = scmp.ne.s32.totalorder %s120, %s122
      %p129 = scmp.eq.s32.totalorder %s23, 1
      %p130 = por %p128, %p129
      %p131 = scmp.ne.s32.totalorder %s122, %s123
      %p132 = scmp.eq.s32.totalorder %s23, 0
      %p133 = por %p131, %p132
      %p134 = scmp.ne.s32.totalorder %s122, %s123
      %p135 = scmp.eq.s32.totalorder %s24, 1
      %p136 = por %p134, %p135
      %p138 = scmp.ne.s32.totalorder %s123, %s137
      %p139 = scmp.eq.s32.totalorder %s24, 0
      %p140 = por %p138, %p139
      %s142 = sadd.s32 %s141, 1
      %p145 = scmp.eq.s32.totalorder %s18, 1
      %p146 = scmp.ne.s32.totalorder %s141, %s143
      %p147 = scmp.eq.s32.totalorder %s18, 0
      %p148 = por %p146, %p147
      %p149 = scmp.ne.s32.totalorder %s141, %s143
      %p150 = scmp.eq.s32.totalorder %s23, 1
      %p151 = por %p149, %p150
      %p152 = scmp.ne.s32.totalorder %s143, %s144
      %p153 = scmp.eq.s32.totalorder %s23, 0
      %p154 = por %p152, %p153
      %p155 = scmp.ne.s32.totalorder %s143, %s144
      %p156 = scmp.eq.s32.totalorder %s24, 1
      %p157 = por %p155, %p156
      %p159 = scmp.ne.s32.totalorder %s144, %s158
      %p160 = scmp.eq.s32.totalorder %s24, 0
      %p161 = por %p159, %p160
      %s163 = sadd.s32 %s162, 1
      %p166 = scmp.eq.s32.totalorder %s18, 1
      %p167 = scmp.ne.s32.totalorder %s162, %s164
      %p168 = scmp.eq.s32.totalorder %s18, 0
      %p169 = por %p167, %p168
      %p170 = scmp.ne.s32.totalorder %s162, %s164
      %p171 = scmp.eq.s32.totalorder %s23, 1
      %p172 = por %p170, %p171
      %p173 = scmp.ne.s32.totalorder %s164, %s165
      %p174 = scmp.eq.s32.totalorder %s23, 0
      %p175 = por %p173, %p174
      %p176 = scmp.ne.s32.totalorder %s164, %s165
      %p177 = scmp.eq.s32.totalorder %s24, 1
      %p178 = por %p176, %p177
      %p180 = scmp.ne.s32.totalorder %s165, %s179
      %p181 = scmp.eq.s32.totalorder %s24, 0
      %p182 = por %p180, %p181
      %s184 = sadd.s32 %s183, 1
      %p187 = scmp.eq.s32.totalorder %s18, 1
      %p188 = scmp.ne.s32.totalorder %s183, %s185
      %p189 = scmp.eq.s32.totalorder %s18, 0
      %p190 = por %p188, %p189
      %p191 = scmp.ne.s32.totalorder %s183, %s185
      %p192 = scmp.eq.s32.totalorder %s23, 1
      %p193 = por %p191, %p192
      %p194 = scmp.ne.s32.totalorder %s185, %s186
      %p195 = scmp.eq.s32.totalorder %s23, 0
      %p196 = por %p194, %p195
      %p197 = scmp.ne.s32.totalorder %s185, %s186
      %p198 = scmp.eq.s32.totalorder %s24, 1
      %p199 = por %p197, %p198
      %p201 = scmp.ne.s32.totalorder %s186, %s200
      %p202 = scmp.eq.s32.totalorder %s24, 0
      %p203 = por %p201, %p202
      %s205 = sadd.s32 %s204, 1
      %p208 = scmp.eq.s32.totalorder %s18, 1
      %p209 = scmp.ne.s32.totalorder %s204, %s206
      %p210 = scmp.eq.s32.totalorder %s18, 0
      %p211 = por %p209, %p210
      %p212 = scmp.ne.s32.totalorder %s204, %s206
      %p213 = scmp.eq.s32.totalorder %s23, 1
      %p214 = por %p212, %p213
      %p215 = scmp.ne.s32.totalorder %s206, %s207
      %p216 = scmp.eq.s32.totalorder %s23, 0
      %p217 = por %p215, %p216
      %p218 = scmp.ne.s32.totalorder %s206, %s207
      %p219 = scmp.eq.s32.totalorder %s24, 1
      %p220 = por %p218, %p219
      %p222 = scmp.ne.s32.totalorder %s207, %s221
      %p223 = scmp.eq.s32.totalorder %s24, 0
      %p224 = por %p222, %p223
      %s226 = sadd.s32 %s225, 1
      %p229 = scmp.eq.s32.totalorder %s18, 1
      %p230 = scmp.ne.s32.totalorder %s225, %s227
      %p231 = scmp.eq.s32.totalorder %s18, 0
      %p232 = por %p230, %p231
      %p233 = scmp.ne.s32.totalorder %s225, %s227
      %p234 = scmp.eq.s32.totalorder %s23, 1
      %p235 = por %p233, %p234
      %p236 = scmp.ne.s32.totalorder %s227, %s228
      %p237 = scmp.eq.s32.totalorder %s23, 0
      %p238 = por %p236, %p237
      %p239 = scmp.ne.s32.totalorder %s227, %s228
      %p240 = scmp.eq.s32.totalorder %s24, 1
      %p241 = por %p239, %p240
      %p243 = scmp.ne.s32.totalorder %s228, %s242
      %p244 = scmp.eq.s32.totalorder %s24, 0
      %p245 = por %p243, %p244
      %s246 = ssub.s32 %s25, %s37
      %s247 = ssub.s32 %s26, %s33
      %s248 = sor.u32 %s246, %s247
      %p249 = scmp.eq.s32.totalorder %s248, 0
      %s251 = sadd.s32 %s250, 1
      %s252 = scalar_select %p249, %s250, %s251
      %p255 = pneg %p249
      %p256 = scmp.eq.s32.totalorder %s18, 1
      %p257 = por %p255, %p256
      %p258 = scmp.ne.s32.totalorder %s250, %s253
      %p259 = scmp.eq.s32.totalorder %s18, 0
      %p260 = por %p258, %p259
      %p261 = scmp.ne.s32.totalorder %s250, %s253
      %p262 = scmp.eq.s32.totalorder %s23, 1
      %p263 = por %p261, %p262
      %p264 = scmp.ne.s32.totalorder %s253, %s254
      %p265 = scmp.eq.s32.totalorder %s23, 0
      %p266 = por %p264, %p265
      %p267 = scmp.ne.s32.totalorder %s253, %s254
      %p268 = scmp.eq.s32.totalorder %s24, 1
      %p269 = por %p267, %p268
      %p271 = scmp.ne.s32.totalorder %s254, %s270
      %p272 = scmp.eq.s32.totalorder %s24, 0
      %p273 = por %p271, %p272
      %p274 = scmp.le.s32.totalorder 1, %s18
      %p275 = scmp.lt.s32.totalorder %s18, 3
      %p276 = pnand %p274, %p275
      %p277 = pneg %p276
      // Predicated region
      $region9: #{cfconv_pallas.1} parent=5 // pred_check
        _
      $region10: #{cfconv_pallas.1} parent=5 // pred_check_branch
        %279 = sbr.rel (%p276) target = $region12
      $region11: #{cfconv_pallas.1} parent=5 // pred_region
        %s280 = ssub.s32 %s18, 1
        // Predicated region
        $region13: #{cfconv_pallas.1} parent=11 // pred_check
          %p281 = pneg %p133
        $region14: #{cfconv_pallas.1} parent=11 // pred_check_branch
          %283 = sbr.rel (%p281) target = $region16
        $region15: #{cfconv_pallas.1} parent=11 // pred_region
          _
        $region16: #{cfconv_pallas.1} parent=11 // pred_fallthru
          _
        // Predicated region
        $region17: #{cfconv_pallas.1} parent=11 // pred_check
          %p284 = pneg %p154
        $region18: #{cfconv_pallas.1} parent=11 // pred_check_branch
          %286 = sbr.rel (%p284) target = $region20
        $region19: #{cfconv_pallas.1} parent=11 // pred_region
          _
        $region20: #{cfconv_pallas.1} parent=11 // pred_fallthru
          _
        // Predicated region
        $region21: #{cfconv_pallas.1} parent=11 // pred_check
          %p287 = pneg %p175
        $region22: #{cfconv_pallas.1} parent=11 // pred_check_branch
          %289 = sbr.rel (%p287) target = $region24
        $region23: #{cfconv_pallas.1} parent=11 // pred_region
          _
        $region24: #{cfconv_pallas.1} parent=11 // pred_fallthru
          _
        // Predicated region
        $region25: #{cfconv_pallas.1} parent=11 // pred_check
          %p290 = pneg %p196
        $region26: #{cfconv_pallas.1} parent=11 // pred_check_branch
          %292 = sbr.rel (%p290) target = $region28
        $region27: #{cfconv_pallas.1} parent=11 // pred_region
          _
        $region28: #{cfconv_pallas.1} parent=11 // pred_fallthru
          _
        // Predicated region
        $region29: #{cfconv_pallas.1} parent=11 // pred_check
          %p293 = pneg %p217
        $region30: #{cfconv_pallas.1} parent=11 // pred_check_branch
          %295 = sbr.rel (%p293) target = $region32
        $region31: #{cfconv_pallas.1} parent=11 // pred_region
          _
        $region32: #{cfconv_pallas.1} parent=11 // pred_fallthru
          _
        // Predicated region
        $region33: #{cfconv_pallas.1} parent=11 // pred_check
          %p296 = pneg %p238
        $region34: #{cfconv_pallas.1} parent=11 // pred_check_branch
          %298 = sbr.rel (%p296) target = $region36
        $region35: #{cfconv_pallas.1} parent=11 // pred_region
          _
        $region36: #{cfconv_pallas.1} parent=11 // pred_fallthru
          _
      $region12: #{cfconv_pallas.1} parent=5 // pred_fallthru
        _
      %p299 = scmp.lt.s32.totalorder %s18, 2
      // Predicated region
      $region37: #{cfconv_pallas.1} parent=5 // pred_check
        %p300 = pneg %p299
      $region38: #{cfconv_pallas.1} parent=5 // pred_check_branch
        %302 = sbr.rel (%p300) target = $region40
      $region39: #{cfconv_pallas.1} parent=5 // pred_region
        // Predicated region
        $region41: #{cfconv_pallas.1} parent=39 // pred_check
          %p303 = pneg %p52
        $region42: #{cfconv_pallas.1} parent=39 // pred_check_branch
          %305 = sbr.rel (%p303) target = $region44
        $region43: #{cfconv_pallas.1} parent=39 // pred_region
          %s306 = smul.u32 8, %s26
          %p307 = scmp.lt.s32.totalorder %s25, 1
          %s308 = scalar_select %p307, %s25, 1
          %p309 = scmp.lt.s32.totalorder %s306, 7
          %s310 = scalar_select %p309, %s306, 7
          %s311 = smul.addr %s308, 8
          %s312 = sadd.s32 %s310, %s311
          %s313 = smul.addr %s312, 8
          %s314 = scalar_lea.vmem %s0, %s313
          %s315 = smul.u32 8, %s26
        $region44: #{cfconv_pallas.1} parent=39 // pred_fallthru
          _
        // Predicated region
        $region45: #{cfconv_pallas.1} parent=39 // pred_check
          %p316 = pneg %p80
        $region46: #{cfconv_pallas.1} parent=39 // pred_check_branch
          %318 = sbr.rel (%p316) target = $region48
        $region47: #{cfconv_pallas.1} parent=39 // pred_region
          %s319 = smul.u32 8, %s26
          %p320 = scmp.lt.s32.totalorder %s25, 1
          %s321 = scalar_select %p320, %s25, 1
          %p322 = scmp.lt.s32.totalorder %s319, 7
          %s323 = scalar_select %p322, %s319, 7
          %s324 = smul.addr %s321, 8
          %s325 = sadd.s32 %s323, %s324
          %s326 = smul.addr %s325, 8
          %s327 = scalar_lea.vmem %s1, %s326
          %s328 = smul.u32 8, %s26
        $region48: #{cfconv_pallas.1} parent=39 // pred_fallthru
          _
        // Predicated region
        $region49: #{cfconv_pallas.1} parent=39 // pred_check
          %p329 = pneg %p106
        $region50: #{cfconv_pallas.1} parent=39 // pred_check_branch
          %331 = sbr.rel (%p329) target = $region52
        $region51: #{cfconv_pallas.1} parent=39 // pred_region
          %p332 = scmp.lt.s32.totalorder %s25, 1
          %s333 = scalar_select %p332, %s25, 1
          %s334 = smul.addr %s333, 2
          %s335 = smul.addr %s334, 4
          %s336 = scalar_lea.vmem %s2, %s335
        $region52: #{cfconv_pallas.1} parent=39 // pred_fallthru
          _
      $region40: #{cfconv_pallas.1} parent=5 // pred_fallthru
        _
      %p337 = scmp.le.s32.totalorder 1, %s18
      %p338 = scmp.lt.s32.totalorder %s18, 3
      %p339 = pnand %p337, %p338
      %p340 = pneg %p339
      // Predicated region
      $region53: #{cfconv_pallas.1} parent=5 // pred_check
        _
      $region54: #{cfconv_pallas.1} parent=5 // pred_check_branch
        %342 = sbr.rel (%p339) target = $region56
      $region55: #{cfconv_pallas.1} parent=5 // pred_region
        %s343 = ssub.s32 %s18, 1
        %s344 = smul.u32 8, %s28
        %p345 = scmp.lt.s32.totalorder %s27, 1
        %s346 = scalar_select %p345, %s27, 1
        %p347 = scmp.lt.s32.totalorder %s344, 7
        %s348 = scalar_select %p347, %s344, 7
        %s349 = smul.addr %s346, 8
        %s350 = sadd.s32 %s348, %s349
        %s351 = smul.addr %s350, 8
        %s352 = scalar_lea.vmem %s0, %s351
        %p353 = pneg %p58
        %p354 = pneg %p55
        %s355 = smul.u32 8, %s28
        %p356 = scmp.lt.s32.totalorder %s27, 1
        %s357 = scalar_select %p356, %s27, 1
        %p358 = scmp.lt.s32.totalorder %s355, 7
        %s359 = scalar_select %p358, %s355, 7
        %s360 = smul.addr %s357, 8
        %s361 = sadd.s32 %s359, %s360
        %s362 = smul.addr %s361, 8
        %s363 = scalar_lea.vmem %s1, %s362
        %p364 = pneg %p86
        %p365 = pneg %p83
        %p366 = scmp.lt.s32.totalorder %s27, 1
        %s367 = scalar_select %p366, %s27, 1
        %s368 = smul.addr %s367, 2
        %s369 = smul.addr %s368, 4
        %s370 = scalar_lea.vmem %s2, %s369
        %p371 = pneg %p112
        %p372 = pneg %p109
        %p373 = pneg %p133
        %p374 = pneg %p130
        %p375 = pneg %p154
        %p376 = pneg %p151
        %p377 = pneg %p175
        %p378 = pneg %p172
        %p379 = pneg %p196
        %p380 = pneg %p193
        %p381 = pneg %p217
        %p382 = pneg %p214
        %p383 = pneg %p238
        %p384 = pneg %p235
        %p385 = pneg %p266
        %p386 = pneg %p263
        %s387 = sand.u32 %s253, 1
        %s388 = scalar_lea.sflag [#allocation3], %s387
        %s389 = sand.u32 %s253, 1
        %s390 = smul.addr %s389, 8
        %s391 = scalar_lea.vmem [#allocation2], %s390
        %s392 = smul.u32 8, %s28
        %p393 = scmp.lt.s32.totalorder %s27, 1
        %s394 = scalar_select %p393, %s27, 1
        %p395 = scmp.lt.s32.totalorder %s392, 7
        %s396 = scalar_select %p395, %s392, 7
        %s397 = smul.addr %s394, 8
        %s398 = sadd.s32 %s396, %s397
        %s399 = smul.addr %s398, 8
        %s400 = scalar_lea.vmem %s0, %s399
        %s401 = smul.u32 8, %s28
        %s402 = smul.u32 8, %s28
        %p403 = scmp.lt.s32.totalorder %s27, 1
        %s404 = scalar_select %p403, %s27, 1
        %p405 = scmp.lt.s32.totalorder %s402, 7
        %s406 = scalar_select %p405, %s402, 7
        %s407 = smul.addr %s404, 8
        %s408 = sadd.s32 %s406, %s407
        %s409 = smul.addr %s408, 8
        %s410 = scalar_lea.vmem %s1, %s409
        %s411 = smul.u32 8, %s28
        %p412 = scmp.lt.s32.totalorder %s27, 1
        %s413 = scalar_select %p412, %s27, 1
        %s414 = smul.addr %s413, 2
        %s415 = smul.addr %s414, 4
        %s416 = scalar_lea.vmem %s2, %s415
        %v418 = vld [vmem:[%s400] sm:$0xff]
        %v419 = vld [vmem:[%s400 + $0x8] sm:$0xff]
        %v420 = vld [vmem:[%s400 + $0x10] sm:$0xff]
        %v421 = vld [vmem:[%s400 + $0x18] sm:$0xff]
        %v422 = vld [vmem:[%s400 + $0x20] sm:$0xff]
        %v423 = vld [vmem:[%s400 + $0x28] sm:$0xff]
        %v424 = vld [vmem:[%s400 + $0x30] sm:$0xff]
        %v425 = vld [vmem:[%s400 + $0x38] sm:$0xff]
        %v426 = vld [vmem:[%s3] sm:$0xff]
        %v427 = vld [vmem:[%s3 + $0x8] sm:$0xff]
        %v428 = vld [vmem:[%s3 + $0x10] sm:$0xff]
        %v429 = vld [vmem:[%s3 + $0x18] sm:$0xff]
        %v430 = vld [vmem:[%s3 + $0x20] sm:$0xff]
        %v431 = vld [vmem:[%s3 + $0x28] sm:$0xff]
        %v432 = vld [vmem:[%s3 + $0x30] sm:$0xff]
        %v433 = vld [vmem:[%s3 + $0x38] sm:$0xff]
        %v434 = vld [vmem:[%s3 + $0x40] sm:$0xff]
        %v435 = vld [vmem:[%s3 + $0x48] sm:$0xff]
        %v436 = vld [vmem:[%s3 + $0x50] sm:$0xff]
        %v437 = vld [vmem:[%s3 + $0x58] sm:$0xff]
        %v438 = vld [vmem:[%s3 + $0x60] sm:$0xff]
        %v439 = vld [vmem:[%s3 + $0x68] sm:$0xff]
        %v440 = vld [vmem:[%s3 + $0x70] sm:$0xff]
        %v441 = vld [vmem:[%s3 + $0x78] sm:$0xff]
        %v442 = vld [vmem:[%s4] sm:$0x1]
        %v444 = vlaneseq
        %v445 = vshrl.u32 %v444, 7
        %v446 = vsub.s32 0, %v445
        %v447 = vrot.slane %v442, %v446
        %449 = vmatprep.subr.mxu0 0.0
        %450 = vmatpush1.msra.mxu0 %v426
        %451 = vmatprep.subr.mxu0 0.0
        %452 = vmatpush1.msra.mxu0 %v427
        %453 = vmatprep.subr.mxu0 0.0
        %454 = vmatpush1.msra.mxu0 %v428
        %455 = vmatprep.subr.mxu0 0.0
        %456 = vmatpush1.msra.mxu0 %v429
        %457 = vmatprep.subr.mxu0 0.0
        %458 = vmatpush1.msra.mxu0 %v430
        %459 = vmatprep.subr.mxu0 0.0
        %460 = vmatpush1.msra.mxu0 %v431
        %461 = vmatprep.subr.mxu0 0.0
        %462 = vmatpush1.msra.mxu0 %v432
        %463 = vmatprep.subr.mxu0 0.0
        %464 = vmatpush1.msra.mxu0 %v433
        %465 = vmatprep.subr.mxu0 0.0
        %466 = vmatpush1.msra.mxu0 %v434
        %467 = vmatprep.subr.mxu0 0.0
        %468 = vmatpush1.msra.mxu0 %v435
        %469 = vmatprep.subr.mxu0 0.0
        %470 = vmatpush1.msra.mxu0 %v436
        %471 = vmatprep.subr.mxu0 0.0
        %472 = vmatpush1.msra.mxu0 %v437
        %473 = vmatprep.subr.mxu0 0.0
        %474 = vmatpush1.msra.mxu0 %v438
        %475 = vmatprep.subr.mxu0 0.0
        %476 = vmatpush1.msra.mxu0 %v439
        %477 = vmatprep.subr.mxu0 0.0
        %478 = vmatpush1.msra.mxu0 %v440
        %479 = vmatprep.subr.mxu0 0.0
        %480 = vmatpush1.msra.mxu0 %v441
        %481 = vmatprep.subr.mxu0 0.0
        %482 = vmatpush1.msra.mxu0 0.0
        %483 = vmatprep.subr.mxu0 0.0
        %484 = vmatpush1.msra.mxu0 0.0
        %485 = vmatprep.subr.mxu0 0.0
        %486 = vmatpush1.msra.mxu0 0.0
        %487 = vmatprep.subr.mxu0 0.0
        %488 = vmatpush1.msra.mxu0 0.0
        %489 = vmatprep.subr.mxu0 0.0
        %490 = vmatpush1.msra.mxu0 0.0
        %491 = vmatprep.subr.mxu0 0.0
        %492 = vmatpush1.msra.mxu0 0.0
        %493 = vmatprep.subr.mxu0 0.0
        %494 = vmatpush1.msra.mxu0 0.0
        %495 = vmatprep.subr.mxu0 0.0
        %496 = vmatpush1.msra.mxu0 0.0
        %497 = vmatprep.subr.mxu0 0.0
        %498 = vmatpush1.msra.mxu0 0.0
        %499 = vmatprep.subr.mxu0 0.0
        %500 = vmatpush1.msra.mxu0 0.0
        %501 = vmatprep.subr.mxu0 0.0
        %502 = vmatpush1.msra.mxu0 0.0
        %503 = vmatprep.subr.mxu0 0.0
        %504 = vmatpush1.msra.mxu0 0.0
        %505 = vmatprep.subr.mxu0 0.0
        %506 = vmatpush1.msra.mxu0 0.0
        %507 = vmatprep.subr.mxu0 0.0
        %508 = vmatpush1.msra.mxu0 0.0
        %509 = vmatprep.subr.mxu0 0.0
        %510 = vmatpush1.msra.mxu0 0.0
        %511 = vmatprep.subr.mxu0 0.0
        %512 = vmatpush1.msra.mxu0 0.0
        %513 = vmatprep.mubr.f32.mxu0 0.0
        %514 = vmatmul.mubr.f32.gmra.mrb[0].mxu0 %v418
        %v515 = vpop.f32.mrb[0].mxu0
        %v516 = vadd.f32 %v447, %v515
        %v517 = vpop.f32.mrb[0].mxu0
        %518 = vmatprep.mubr.f32.mxu0 0.0
        %519 = vmatmul.mubr.f32.gmra.mrb[0].mxu0 %v419
        %v520 = vpop.f32.mrb[0].mxu0
        %v521 = vadd.f32 %v447, %v520
        %v522 = vpop.f32.mrb[0].mxu0
        %523 = vmatprep.mubr.f32.mxu0 0.0
        %524 = vmatmul.mubr.f32.gmra.mrb[0].mxu0 %v420
        %v525 = vpop.f32.mrb[0].mxu0
        %v526 = vadd.f32 %v447, %v525
        %v527 = vpop.f32.mrb[0].mxu0
        %528 = vmatprep.mubr.f32.mxu0 0.0
        %529 = vmatmul.mubr.f32.gmra.mrb[0].mxu0 %v421
        %v530 = vpop.f32.mrb[0].mxu0
        %v531 = vadd.f32 %v447, %v530
        %v532 = vpop.f32.mrb[0].mxu0
        %533 = vmatprep.mubr.f32.mxu0 0.0
        %534 = vmatmul.mubr.f32.gmra.mrb[0].mxu0 %v422
        %v535 = vpop.f32.mrb[0].mxu0
        %v536 = vadd.f32 %v447, %v535
        %v537 = vpop.f32.mrb[0].mxu0
        %538 = vmatprep.mubr.f32.mxu0 0.0
        %539 = vmatmul.mubr.f32.gmra.mrb[0].mxu0 %v423
        %v540 = vpop.f32.mrb[0].mxu0
        %v541 = vadd.f32 %v447, %v540
        %v542 = vpop.f32.mrb[0].mxu0
        %543 = vmatprep.mubr.f32.mxu0 0.0
        %544 = vmatmul.mubr.f32.gmra.mrb[0].mxu0 %v424
        %v545 = vpop.f32.mrb[0].mxu0
        %v546 = vadd.f32 %v447, %v545
        %v547 = vpop.f32.mrb[0].mxu0
        %548 = vmatprep.mubr.f32.mxu0 0.0
        %549 = vmatmul.mubr.f32.gmra.mrb[0].mxu0 %v425
        %v550 = vpop.f32.mrb[0].mxu0
        %v551 = vadd.f32 %v447, %v550
        %v552 = vpop.f32.mrb[0].mxu0
        %553 = vdwg.mxu0
        %v554 = vmax.f32 %v516, 0.0
        %v555 = vmax.f32 %v521, 0.0
        %v556 = vmax.f32 %v526, 0.0
        %v557 = vmax.f32 %v531, 0.0
        %v558 = vmax.f32 %v536, 0.0
        %v559 = vmax.f32 %v541, 0.0
        %v560 = vmax.f32 %v546, 0.0
        %v561 = vmax.f32 %v551, 0.0
        %vm562 = vcmp.ne.f32.partialorder %v516, %v516
        %vm563 = vcmp.ne.f32.partialorder %v521, %v521
        %vm564 = vcmp.ne.f32.partialorder %v526, %v526
        %vm565 = vcmp.ne.f32.partialorder %v531, %v531
        %vm566 = vcmp.ne.f32.partialorder %v536, %v536
        %vm567 = vcmp.ne.f32.partialorder %v541, %v541
        %vm568 = vcmp.ne.f32.partialorder %v546, %v546
        %vm569 = vcmp.ne.f32.partialorder %v551, %v551
        %v570 = vadd.f32 %v516, 0.0
        %v571 = vadd.f32 %v521, 0.0
        %v572 = vadd.f32 %v526, 0.0
        %v573 = vadd.f32 %v531, 0.0
        %v574 = vadd.f32 %v536, 0.0
        %v575 = vadd.f32 %v541, 0.0
        %v576 = vadd.f32 %v546, 0.0
        %v577 = vadd.f32 %v551, 0.0
        %v578 = vand.u32 2147483647, %v516
        %v579 = vand.u32 2147483647, %v521
        %v580 = vand.u32 2147483647, %v526
        %v581 = vand.u32 2147483647, %v531
        %v582 = vand.u32 2147483647, %v536
        %v583 = vand.u32 2147483647, %v541
        %v584 = vand.u32 2147483647, %v546
        %v585 = vand.u32 2147483647, %v551
        %v586 = vsub.f32 0.0, %v578
        %v587 = vsub.f32 0.0, %v579
        %v588 = vsub.f32 0.0, %v580
        %v589 = vsub.f32 0.0, %v581
        %v590 = vsub.f32 0.0, %v582
        %v591 = vsub.f32 0.0, %v583
        %v592 = vsub.f32 0.0, %v584
        %v593 = vsub.f32 0.0, %v585
        %v594 = vmul.f32 %v586, 1.442695
        %v595 = vpow.pop %v594
        %v596 = vmul.f32 %v587, 1.442695
        %v597 = vpow.pop %v596
        %v598 = vmul.f32 %v588, 1.442695
        %v599 = vpow.pop %v598
        %v600 = vmul.f32 %v589, 1.442695
        %v601 = vpow.pop %v600
        %v602 = vmul.f32 %v590, 1.442695
        %v603 = vpow.pop %v602
        %v604 = vmul.f32 %v591, 1.442695
        %v605 = vpow.pop %v604
        %v606 = vmul.f32 %v592, 1.442695
        %v607 = vpow.pop %v606
        %v608 = vmul.f32 %v593, 1.442695
        %v609 = vpow.pop %v608
        %v610 = vadd.f32 %v595, 1.0
        %v611 = vlog2.pop %v610
        %v612 = vmul.f32 %v611, 0.6931472
        %v613 = vmul.f32 -0.5, %v595
        %v614 = vadd.f32 %v613, 1.0
        %v615 = vmul.f32 %v614, %v595
        %v616 = vand.u32 2147483647, %v595
        %vm617 = vcmp.lt.f32.partialorder %v616, 0.0004427343
        %v618 = vsel %vm617, %v615, %v612
        %v619 = vadd.f32 %v597, 1.0
        %v620 = vlog2.pop %v619
        %v621 = vmul.f32 %v620, 0.6931472
        %v622 = vmul.f32 -0.5, %v597
        %v623 = vadd.f32 %v622, 1.0
        %v624 = vmul.f32 %v623, %v597
        %v625 = vand.u32 2147483647, %v597
        %vm626 = vcmp.lt.f32.partialorder %v625, 0.0004427343
        %v627 = vsel %vm626, %v624, %v621
        %v628 = vadd.f32 %v599, 1.0
        %v629 = vlog2.pop %v628
        %v630 = vmul.f32 %v629, 0.6931472
        %v631 = vmul.f32 -0.5, %v599
        %v632 = vadd.f32 %v631, 1.0
        %v633 = vmul.f32 %v632, %v599
        %v634 = vand.u32 2147483647, %v599
        %vm635 = vcmp.lt.f32.partialorder %v634, 0.0004427343
        %v636 = vsel %vm635, %v633, %v630
        %v637 = vadd.f32 %v601, 1.0
        %v638 = vlog2.pop %v637
        %v639 = vmul.f32 %v638, 0.6931472
        %v640 = vmul.f32 -0.5, %v601
        %v641 = vadd.f32 %v640, 1.0
        %v642 = vmul.f32 %v641, %v601
        %v643 = vand.u32 2147483647, %v601
        %vm644 = vcmp.lt.f32.partialorder %v643, 0.0004427343
        %v645 = vsel %vm644, %v642, %v639
        %v646 = vadd.f32 %v603, 1.0
        %v647 = vlog2.pop %v646
        %v648 = vmul.f32 %v647, 0.6931472
        %v649 = vmul.f32 -0.5, %v603
        %v650 = vadd.f32 %v649, 1.0
        %v651 = vmul.f32 %v650, %v603
        %v652 = vand.u32 2147483647, %v603
        %vm653 = vcmp.lt.f32.partialorder %v652, 0.0004427343
        %v654 = vsel %vm653, %v651, %v648
        %v655 = vadd.f32 %v605, 1.0
        %v656 = vlog2.pop %v655
        %v657 = vmul.f32 %v656, 0.6931472
        %v658 = vmul.f32 -0.5, %v605
        %v659 = vadd.f32 %v658, 1.0
        %v660 = vmul.f32 %v659, %v605
        %v661 = vand.u32 2147483647, %v605
        %vm662 = vcmp.lt.f32.partialorder %v661, 0.0004427343
        %v663 = vsel %vm662, %v660, %v657
        %v664 = vadd.f32 %v607, 1.0
        %v665 = vlog2.pop %v664
        %v666 = vmul.f32 %v665, 0.6931472
        %v667 = vmul.f32 -0.5, %v607
        %v668 = vadd.f32 %v667, 1.0
        %v669 = vmul.f32 %v668, %v607
        %v670 = vand.u32 2147483647, %v607
        %vm671 = vcmp.lt.f32.partialorder %v670, 0.0004427343
        %v672 = vsel %vm671, %v669, %v666
        %v673 = vadd.f32 %v609, 1.0
        %v674 = vlog2.pop %v673
        %v675 = vmul.f32 %v674, 0.6931472
        %v676 = vmul.f32 -0.5, %v609
        %v677 = vadd.f32 %v676, 1.0
        %v678 = vmul.f32 %v677, %v609
        %v679 = vand.u32 2147483647, %v609
        %vm680 = vcmp.lt.f32.partialorder %v679, 0.0004427343
        %v681 = vsel %vm680, %v678, %v675
        %v682 = vadd.f32 %v554, %v618
        %v683 = vadd.f32 %v555, %v627
        %v684 = vadd.f32 %v556, %v636
        %v685 = vadd.f32 %v557, %v645
        %v686 = vadd.f32 %v558, %v654
        %v687 = vadd.f32 %v559, %v663
        %v688 = vadd.f32 %v560, %v672
        %v689 = vadd.f32 %v561, %v681
        %v690 = vsel %vm562, %v570, %v682
        %v691 = vsel %vm563, %v571, %v683
        %v692 = vsel %vm564, %v572, %v684
        %v693 = vsel %vm565, %v573, %v685
        %v694 = vsel %vm566, %v574, %v686
        %v695 = vsel %vm567, %v575, %v687
        %v696 = vsel %vm568, %v576, %v688
        %v697 = vsel %vm569, %v577, %v689
        %v698 = vsub.f32 %v690, 0.6931472
        %v699 = vsub.f32 %v691, 0.6931472
        %v700 = vsub.f32 %v692, 0.6931472
        %v701 = vsub.f32 %v693, 0.6931472
        %v702 = vsub.f32 %v694, 0.6931472
        %v703 = vsub.f32 %v695, 0.6931472
        %v704 = vsub.f32 %v696, 0.6931472
        %v705 = vsub.f32 %v697, 0.6931472
        %v706 = vld [vmem:[%s5] sm:$0xff]
        %v707 = vld [vmem:[%s5 + $0x8] sm:$0xff]
        %v708 = vld [vmem:[%s5 + $0x10] sm:$0xff]
        %v709 = vld [vmem:[%s5 + $0x18] sm:$0xff]
        %v710 = vld [vmem:[%s5 + $0x20] sm:$0xff]
        %v711 = vld [vmem:[%s5 + $0x28] sm:$0xff]
        %v712 = vld [vmem:[%s5 + $0x30] sm:$0xff]
        %v713 = vld [vmem:[%s5 + $0x38] sm:$0xff]
        %v714 = vld [vmem:[%s5 + $0x40] sm:$0xff]
        %v715 = vld [vmem:[%s5 + $0x48] sm:$0xff]
        %v716 = vld [vmem:[%s5 + $0x50] sm:$0xff]
        %v717 = vld [vmem:[%s5 + $0x58] sm:$0xff]
        %v718 = vld [vmem:[%s5 + $0x60] sm:$0xff]
        %v719 = vld [vmem:[%s5 + $0x68] sm:$0xff]
        %v720 = vld [vmem:[%s5 + $0x70] sm:$0xff]
        %v721 = vld [vmem:[%s5 + $0x78] sm:$0xff]
        %v722 = vld [vmem:[%s6] sm:$0x1]
        %v724 = vlaneseq
        %v725 = vshrl.u32 %v724, 7
        %v726 = vsub.s32 0, %v725
        %v727 = vrot.slane %v722, %v726
        %729 = vmatprep.subr.mxu0 0.0
        %730 = vmatpush1.msra.mxu0 %v706
        %731 = vmatprep.subr.mxu0 0.0
        %732 = vmatpush1.msra.mxu0 %v707
        %733 = vmatprep.subr.mxu0 0.0
        %734 = vmatpush1.msra.mxu0 %v708
        %735 = vmatprep.subr.mxu0 0.0
        %736 = vmatpush1.msra.mxu0 %v709
        %737 = vmatprep.subr.mxu0 0.0
        %738 = vmatpush1.msra.mxu0 %v710
        %739 = vmatprep.subr.mxu0 0.0
        %740 = vmatpush1.msra.mxu0 %v711
        %741 = vmatprep.subr.mxu0 0.0
        %742 = vmatpush1.msra.mxu0 %v712
        %743 = vmatprep.subr.mxu0 0.0
        %744 = vmatpush1.msra.mxu0 %v713
        %745 = vmatprep.subr.mxu0 0.0
        %746 = vmatpush1.msra.mxu0 %v714
        %747 = vmatprep.subr.mxu0 0.0
        %748 = vmatpush1.msra.mxu0 %v715
        %749 = vmatprep.subr.mxu0 0.0
        %750 = vmatpush1.msra.mxu0 %v716
        %751 = vmatprep.subr.mxu0 0.0
        %752 = vmatpush1.msra.mxu0 %v717
        %753 = vmatprep.subr.mxu0 0.0
        %754 = vmatpush1.msra.mxu0 %v718
        %755 = vmatprep.subr.mxu0 0.0
        %756 = vmatpush1.msra.mxu0 %v719
        %757 = vmatprep.subr.mxu0 0.0
        %758 = vmatpush1.msra.mxu0 %v720
        %759 = vmatprep.subr.mxu0 0.0
        %760 = vmatpush1.msra.mxu0 %v721
        %761 = vmatprep.subr.mxu0 0.0
        %762 = vmatpush1.msra.mxu0 0.0
        %763 = vmatprep.subr.mxu0 0.0
        %764 = vmatpush1.msra.mxu0 0.0
        %765 = vmatprep.subr.mxu0 0.0
        %766 = vmatpush1.msra.mxu0 0.0
        %767 = vmatprep.subr.mxu0 0.0
        %768 = vmatpush1.msra.mxu0 0.0
        %769 = vmatprep.subr.mxu0 0.0
        %770 = vmatpush1.msra.mxu0 0.0
        %771 = vmatprep.subr.mxu0 0.0
        %772 = vmatpush1.msra.mxu0 0.0
        %773 = vmatprep.subr.mxu0 0.0
        %774 = vmatpush1.msra.mxu0 0.0
        %775 = vmatprep.subr.mxu0 0.0
        %776 = vmatpush1.msra.mxu0 0.0
        %777 = vmatprep.subr.mxu0 0.0
        %778 = vmatpush1.msra.mxu0 0.0
        %779 = vmatprep.subr.mxu0 0.0
        %780 = vmatpush1.msra.mxu0 0.0
        %781 = vmatprep.subr.mxu0 0.0
        %782 = vmatpush1.msra.mxu0 0.0
        %783 = vmatprep.subr.mxu0 0.0
        %784 = vmatpush1.msra.mxu0 0.0
        %785 = vmatprep.subr.mxu0 0.0
        %786 = vmatpush1.msra.mxu0 0.0
        %787 = vmatprep.subr.mxu0 0.0
        %788 = vmatpush1.msra.mxu0 0.0
        %789 = vmatprep.subr.mxu0 0.0
        %790 = vmatpush1.msra.mxu0 0.0
        %791 = vmatprep.subr.mxu0 0.0
        %792 = vmatpush1.msra.mxu0 0.0
        %793 = vmatprep.mubr.f32.mxu0 0.0
        %794 = vmatmul.mubr.f32.gmra.mrb[0].mxu0 %v698
        %v795 = vpop.f32.mrb[0].mxu0
        %v796 = vadd.f32 %v727, %v795
        %v797 = vpop.f32.mrb[0].mxu0
        %798 = vmatprep.mubr.f32.mxu0 0.0
        %799 = vmatmul.mubr.f32.gmra.mrb[0].mxu0 %v699
        %v800 = vpop.f32.mrb[0].mxu0
        %v801 = vadd.f32 %v727, %v800
        %v802 = vpop.f32.mrb[0].mxu0
        %803 = vmatprep.mubr.f32.mxu0 0.0
        %804 = vmatmul.mubr.f32.gmra.mrb[0].mxu0 %v700
        %v805 = vpop.f32.mrb[0].mxu0
        %v806 = vadd.f32 %v727, %v805
        %v807 = vpop.f32.mrb[0].mxu0
        %808 = vmatprep.mubr.f32.mxu0 0.0
        %809 = vmatmul.mubr.f32.gmra.mrb[0].mxu0 %v701
        %v810 = vpop.f32.mrb[0].mxu0
        %v811 = vadd.f32 %v727, %v810
        %v812 = vpop.f32.mrb[0].mxu0
        %813 = vmatprep.mubr.f32.mxu0 0.0
        %814 = vmatmul.mubr.f32.gmra.mrb[0].mxu0 %v702
        %v815 = vpop.f32.mrb[0].mxu0
        %v816 = vadd.f32 %v727, %v815
        %v817 = vpop.f32.mrb[0].mxu0
        %818 = vmatprep.mubr.f32.mxu0 0.0
        %819 = vmatmul.mubr.f32.gmra.mrb[0].mxu0 %v703
        %v820 = vpop.f32.mrb[0].mxu0
        %v821 = vadd.f32 %v727, %v820
        %v822 = vpop.f32.mrb[0].mxu0
        %823 = vmatprep.mubr.f32.mxu0 0.0
        %824 = vmatmul.mubr.f32.gmra.mrb[0].mxu0 %v704
        %v825 = vpop.f32.mrb[0].mxu0
        %v826 = vadd.f32 %v727, %v825
        %v827 = vpop.f32.mrb[0].mxu0
        %828 = vmatprep.mubr.f32.mxu0 0.0
        %829 = vmatmul.mubr.f32.gmra.mrb[0].mxu0 %v705
        %v830 = vpop.f32.mrb[0].mxu0
        %v831 = vadd.f32 %v727, %v830
        %v832 = vpop.f32.mrb[0].mxu0
        %833 = vdwg.mxu0
        %v834 = vld [vmem:[%s410] sm:$0xff]
        %v835 = vld [vmem:[%s410 + $0x8] sm:$0xff]
        %v836 = vld [vmem:[%s410 + $0x10] sm:$0xff]
        %v837 = vld [vmem:[%s410 + $0x18] sm:$0xff]
        %v838 = vld [vmem:[%s410 + $0x20] sm:$0xff]
        %v839 = vld [vmem:[%s410 + $0x28] sm:$0xff]
        %v840 = vld [vmem:[%s410 + $0x30] sm:$0xff]
        %v841 = vld [vmem:[%s410 + $0x38] sm:$0xff]
        %v842 = vlaneseq
        %v843 = vand.u32 %v842, 127
        %844 = vset.pattern.permute.xlu0 0
        %845 = vperm.xlu0 %844, %v834
        %v846 = vpop.permute.xlu0 %845
        %847 = vset.pattern.permute.xlu0 0
        %848 = vperm.xlu0 %847, %v835
        %v849 = vpop.permute.xlu0 %848
        %850 = vset.pattern.permute.xlu0 0
        %851 = vperm.xlu0 %850, %v836
        %v852 = vpop.permute.xlu0 %851
        %853 = vset.pattern.permute.xlu0 0
        %854 = vperm.xlu0 %853, %v837
        %v855 = vpop.permute.xlu0 %854
        %856 = vset.pattern.permute.xlu0 0
        %857 = vperm.xlu0 %856, %v838
        %v858 = vpop.permute.xlu0 %857
        %859 = vset.pattern.permute.xlu0 0
        %860 = vperm.xlu0 %859, %v839
        %v861 = vpop.permute.xlu0 %860
        %862 = vset.pattern.permute.xlu0 0
        %863 = vperm.xlu0 %862, %v840
        %v864 = vpop.permute.xlu0 %863
        %865 = vset.pattern.permute.xlu0 0
        %866 = vperm.xlu0 %865, %v841
        %v867 = vpop.permute.xlu0 %866
        %vm868 = vcmp.eq.s32.totalorder %v843, %v846
        %vm869 = vcmp.eq.s32.totalorder %v843, %v849
        %vm870 = vcmp.eq.s32.totalorder %v843, %v852
        %vm871 = vcmp.eq.s32.totalorder %v843, %v855
        %vm872 = vcmp.eq.s32.totalorder %v843, %v858
        %vm873 = vcmp.eq.s32.totalorder %v843, %v861
        %vm874 = vcmp.eq.s32.totalorder %v843, %v864
        %vm875 = vcmp.eq.s32.totalorder %v843, %v867
        %v876 = vsel %vm868, 1, 0
        %v877 = vsel %vm869, 1, 0
        %v878 = vsel %vm870, 1, 0
        %v879 = vsel %vm871, 1, 0
        %v880 = vsel %vm872, 1, 0
        %v881 = vsel %vm873, 1, 0
        %v882 = vsel %vm874, 1, 0
        %v883 = vsel %vm875, 1, 0
        %v884 = vcvt.s32.f32 %v876
        %v885 = vcvt.s32.f32 %v877
        %v886 = vcvt.s32.f32 %v878
        %v887 = vcvt.s32.f32 %v879
        %v888 = vcvt.s32.f32 %v880
        %v889 = vcvt.s32.f32 %v881
        %v890 = vcvt.s32.f32 %v882
        %v891 = vcvt.s32.f32 %v883
        %v892 = vpack.c.bf16 %v885, %v884
        %v893 = vpack.c.bf16 %v887, %v886
        %v894 = vpack.c.bf16 %v889, %v888
        %v895 = vpack.c.bf16 %v891, %v890
        %s896 = smul.u32 0, 2
        %s897 = smul.addr %s896, 4
        %s898 = scalar_lea.vmem %s416, %s897
        %v899 = vld [vmem:[%s898] sm:$0xff]
        %v901 = vunpack.c.l.b16 %v899
        %v902 = vunpack.c.h.b16 %v899
        %v903 = vpack.c.b16 %v901, %v901
        %v904 = vpack.c.b16 %v902, %v902
        %vm905 = vcmask 64512
        %v907 = vsel %vm905, %v892, 0
        %v910 = vsel %vm905, %v893, 0
        %v913 = vsel %vm905, %v894, 0
        %v916 = vsel %vm905, %v895, 0
        %vm918 = vcmask 1043456
        %v920 = vsel %vm918, %v903, 0
        %v923 = vsel %vm918, %v904, 0
        %925 = vmatprep.subr.bf16.mxu0 %v923
        %926 = vmatpush1.bf16.msra.mxu0 %v920
        %927 = vmatprep.subr.bf16.mxu0 0
        %928 = vmatpush1.bf16.msra.mxu0 0
        %929 = vmatprep.subr.bf16.mxu0 0
        %930 = vmatpush1.bf16.msra.mxu0 0
        %931 = vmatprep.subr.bf16.mxu0 0
        %932 = vmatpush1.bf16.msra.mxu0 0
        %933 = vmatprep.subr.bf16.mxu0 0
        %934 = vmatpush1.bf16.msra.mxu0 0
        %935 = vmatprep.subr.bf16.mxu0 0
        %936 = vmatpush1.bf16.msra.mxu0 0
        %937 = vmatprep.subr.bf16.mxu0 0
        %938 = vmatpush1.bf16.msra.mxu0 0
        %939 = vmatprep.subr.bf16.mxu0 0
        %940 = vmatpush1.bf16.msra.mxu0 0
        %941 = vmatprep.subr.bf16.mxu0 0
        %942 = vmatpush1.bf16.msra.mxu0 0
        %943 = vmatprep.subr.bf16.mxu0 0
        %944 = vmatpush1.bf16.msra.mxu0 0
        %945 = vmatprep.subr.bf16.mxu0 0
        %946 = vmatpush1.bf16.msra.mxu0 0
        %947 = vmatprep.subr.bf16.mxu0 0
        %948 = vmatpush1.bf16.msra.mxu0 0
        %949 = vmatprep.subr.bf16.mxu0 0
        %950 = vmatpush1.bf16.msra.mxu0 0
        %951 = vmatprep.subr.bf16.mxu0 0
        %952 = vmatpush1.bf16.msra.mxu0 0
        %953 = vmatprep.subr.bf16.mxu0 0
        %954 = vmatpush1.bf16.msra.mxu0 0
        %955 = vmatprep.subr.bf16.mxu0 0
        %956 = vmatpush1.bf16.msra.mxu0 0
        %957 = vmatprep.mubr.bf16.mxu0 0
        %958 = vmatmul.mubr.bf16.gmra.mrb[0].mxu0 %v907
        %v959 = vpop.f32.mrb[0].mxu0
        %v960 = vadd.f32 0.0, %v959
        %v961 = vpop.f32.mrb[0].mxu0
        %v962 = vadd.f32 0.0, %v961
        %v963 = vpop.f32.mrb[0].mxu0
        %v964 = vadd.f32 0.0, %v963
        %v965 = vpop.f32.mrb[0].mxu0
        %v966 = vadd.f32 0.0, %v965
        %967 = vmatprep.mubr.bf16.mxu0 0
        %968 = vmatmul.mubr.bf16.gmra.mrb[0].mxu0 %v910
        %v969 = vpop.f32.mrb[0].mxu0
        %v970 = vadd.f32 0.0, %v969
        %v971 = vpop.f32.mrb[0].mxu0
        %v972 = vadd.f32 0.0, %v971
        %v973 = vpop.f32.mrb[0].mxu0
        %v974 = vadd.f32 0.0, %v973
        %v975 = vpop.f32.mrb[0].mxu0
        %v976 = vadd.f32 0.0, %v975
        %977 = vmatprep.mubr.bf16.mxu0 0
        %978 = vmatmul.mubr.bf16.gmra.mrb[0].mxu0 %v913
        %v979 = vpop.f32.mrb[0].mxu0
        %v980 = vadd.f32 0.0, %v979
        %v981 = vpop.f32.mrb[0].mxu0
        %v982 = vadd.f32 0.0, %v981
        %v983 = vpop.f32.mrb[0].mxu0
        %v984 = vadd.f32 0.0, %v983
        %v985 = vpop.f32.mrb[0].mxu0
        %v986 = vadd.f32 0.0, %v985
        %987 = vmatprep.mubr.bf16.mxu0 0
        %988 = vmatmul.mubr.bf16.gmra.mrb[0].mxu0 %v916
        %v989 = vpop.f32.mrb[0].mxu0
        %v990 = vadd.f32 0.0, %v989
        %v991 = vpop.f32.mrb[0].mxu0
        %v992 = vadd.f32 0.0, %v991
        %v993 = vpop.f32.mrb[0].mxu0
        %v994 = vadd.f32 0.0, %v993
        %v995 = vpop.f32.mrb[0].mxu0
        %v996 = vadd.f32 0.0, %v995
        %997 = vdwg.mxu0
        %v998 = vadd.f32 %v960, %v962
        %v999 = vadd.f32 %v964, %v966
        %v1000 = vadd.f32 %v970, %v972
        %v1001 = vadd.f32 %v974, %v976
        %v1002 = vadd.f32 %v980, %v982
        %v1003 = vadd.f32 %v984, %v986
        %v1004 = vadd.f32 %v990, %v992
        %v1005 = vadd.f32 %v994, %v996
        %v1006 = vmul.f32 %v998, %v796
        %v1007 = vmul.f32 %v999, %v801
        %v1008 = vmul.f32 %v1000, %v806
        %v1009 = vmul.f32 %v1001, %v811
        %v1010 = vmul.f32 %v1002, %v816
        %v1011 = vmul.f32 %v1003, %v821
        %v1012 = vmul.f32 %v1004, %v826
        %v1013 = vmul.f32 %v1005, %v831
        %v1014 = vrot.slane %v1006, 4
        %v1015 = vadd.f32 %v1006, %v1014
        %v1016 = vrot.slane %v1015, 2
        %v1017 = vadd.f32 %v1015, %v1016
        %v1018 = vrot.slane %v1017, 1
        %v1019 = vadd.f32 %v1017, %v1018
        %v1020 = vrot.slane %v1007, 4
        %v1021 = vadd.f32 %v1007, %v1020
        %v1022 = vrot.slane %v1021, 2
        %v1023 = vadd.f32 %v1021, %v1022
        %v1024 = vrot.slane %v1023, 1
        %v1025 = vadd.f32 %v1023, %v1024
        %v1026 = vrot.slane %v1008, 4
        %v1027 = vadd.f32 %v1008, %v1026
        %v1028 = vrot.slane %v1027, 2
        %v1029 = vadd.f32 %v1027, %v1028
        %v1030 = vrot.slane %v1029, 1
        %v1031 = vadd.f32 %v1029, %v1030
        %v1032 = vrot.slane %v1009, 4
        %v1033 = vadd.f32 %v1009, %v1032
        %v1034 = vrot.slane %v1033, 2
        %v1035 = vadd.f32 %v1033, %v1034
        %v1036 = vrot.slane %v1035, 1
        %v1037 = vadd.f32 %v1035, %v1036
        %v1038 = vrot.slane %v1010, 4
        %v1039 = vadd.f32 %v1010, %v1038
        %v1040 = vrot.slane %v1039, 2
        %v1041 = vadd.f32 %v1039, %v1040
        %v1042 = vrot.slane %v1041, 1
        %v1043 = vadd.f32 %v1041, %v1042
        %v1044 = vrot.slane %v1011, 4
        %v1045 = vadd.f32 %v1011, %v1044
        %v1046 = vrot.slane %v1045, 2
        %v1047 = vadd.f32 %v1045, %v1046
        %v1048 = vrot.slane %v1047, 1
        %v1049 = vadd.f32 %v1047, %v1048
        %v1050 = vrot.slane %v1012, 4
        %v1051 = vadd.f32 %v1012, %v1050
        %v1052 = vrot.slane %v1051, 2
        %v1053 = vadd.f32 %v1051, %v1052
        %v1054 = vrot.slane %v1053, 1
        %v1055 = vadd.f32 %v1053, %v1054
        %v1056 = vrot.slane %v1013, 4
        %v1057 = vadd.f32 %v1013, %v1056
        %v1058 = vrot.slane %v1057, 2
        %v1059 = vadd.f32 %v1057, %v1058
        %v1060 = vrot.slane %v1059, 1
        %v1061 = vadd.f32 %v1059, %v1060
        %v1062 = vld [vmem:[%s7] sm:$0xff]
        %v1063 = vld [vmem:[%s7 + $0x8] sm:$0xff]
        %v1064 = vld [vmem:[%s7 + $0x10] sm:$0xff]
        %v1065 = vld [vmem:[%s7 + $0x18] sm:$0xff]
        %v1066 = vld [vmem:[%s7 + $0x20] sm:$0xff]
        %v1067 = vld [vmem:[%s7 + $0x28] sm:$0xff]
        %v1068 = vld [vmem:[%s7 + $0x30] sm:$0xff]
        %v1069 = vld [vmem:[%s7 + $0x38] sm:$0xff]
        %v1070 = vld [vmem:[%s7 + $0x40] sm:$0xff]
        %v1071 = vld [vmem:[%s7 + $0x48] sm:$0xff]
        %v1072 = vld [vmem:[%s7 + $0x50] sm:$0xff]
        %v1073 = vld [vmem:[%s7 + $0x58] sm:$0xff]
        %v1074 = vld [vmem:[%s7 + $0x60] sm:$0xff]
        %v1075 = vld [vmem:[%s7 + $0x68] sm:$0xff]
        %v1076 = vld [vmem:[%s7 + $0x70] sm:$0xff]
        %v1077 = vld [vmem:[%s7 + $0x78] sm:$0xff]
        %v1078 = vld [vmem:[%s8] sm:$0x1]
        %v1080 = vlaneseq
        %v1081 = vshrl.u32 %v1080, 7
        %v1082 = vsub.s32 0, %v1081
        %v1083 = vrot.slane %v1078, %v1082
        %vm1093 = vcmask 1041409
        %v1094 = vsel %vm1093, %v1025, %v1019
        %vm1095 = vcmask 1042434
        %v1096 = vsel %vm1095, %v1031, %v1094
        %vm1097 = vcmask 1043459
        %v1098 = vsel %vm1097, %v1037, %v1096
        %vm1099 = vcmask 1044484
        %v1100 = vsel %vm1099, %v1043, %v1098
        %vm1101 = vcmask 1045509
        %v1102 = vsel %vm1101, %v1049, %v1100
        %vm1103 = vcmask 1046534
        %v1104 = vsel %vm1103, %v1055, %v1102
        %vm1105 = vcmask 1047559
        %v1106 = vsel %vm1105, %v1061, %v1104
        %1108 = vmatprep.subr.mxu0 0.0
        %1109 = vmatpush1.msra.mxu0 %v1062
        %1110 = vmatprep.subr.mxu0 0.0
        %1111 = vmatpush1.msra.mxu0 %v1063
        %1112 = vmatprep.subr.mxu0 0.0
        %1113 = vmatpush1.msra.mxu0 %v1064
        %1114 = vmatprep.subr.mxu0 0.0
        %1115 = vmatpush1.msra.mxu0 %v1065
        %1116 = vmatprep.subr.mxu0 0.0
        %1117 = vmatpush1.msra.mxu0 %v1066
        %1118 = vmatprep.subr.mxu0 0.0
        %1119 = vmatpush1.msra.mxu0 %v1067
        %1120 = vmatprep.subr.mxu0 0.0
        %1121 = vmatpush1.msra.mxu0 %v1068
        %1122 = vmatprep.subr.mxu0 0.0
        %1123 = vmatpush1.msra.mxu0 %v1069
        %1124 = vmatprep.subr.mxu0 0.0
        %1125 = vmatpush1.msra.mxu0 %v1070
        %1126 = vmatprep.subr.mxu0 0.0
        %1127 = vmatpush1.msra.mxu0 %v1071
        %1128 = vmatprep.subr.mxu0 0.0
        %1129 = vmatpush1.msra.mxu0 %v1072
        %1130 = vmatprep.subr.mxu0 0.0
        %1131 = vmatpush1.msra.mxu0 %v1073
        %1132 = vmatprep.subr.mxu0 0.0
        %1133 = vmatpush1.msra.mxu0 %v1074
        %1134 = vmatprep.subr.mxu0 0.0
        %1135 = vmatpush1.msra.mxu0 %v1075
        %1136 = vmatprep.subr.mxu0 0.0
        %1137 = vmatpush1.msra.mxu0 %v1076
        %1138 = vmatprep.subr.mxu0 0.0
        %1139 = vmatpush1.msra.mxu0 %v1077
        %1140 = vmatprep.subr.mxu0 0.0
        %1141 = vmatpush1.msra.mxu0 0.0
        %1142 = vmatprep.subr.mxu0 0.0
        %1143 = vmatpush1.msra.mxu0 0.0
        %1144 = vmatprep.subr.mxu0 0.0
        %1145 = vmatpush1.msra.mxu0 0.0
        %1146 = vmatprep.subr.mxu0 0.0
        %1147 = vmatpush1.msra.mxu0 0.0
        %1148 = vmatprep.subr.mxu0 0.0
        %1149 = vmatpush1.msra.mxu0 0.0
        %1150 = vmatprep.subr.mxu0 0.0
        %1151 = vmatpush1.msra.mxu0 0.0
        %1152 = vmatprep.subr.mxu0 0.0
        %1153 = vmatpush1.msra.mxu0 0.0
        %1154 = vmatprep.subr.mxu0 0.0
        %1155 = vmatpush1.msra.mxu0 0.0
        %1156 = vmatprep.subr.mxu0 0.0
        %1157 = vmatpush1.msra.mxu0 0.0
        %1158 = vmatprep.subr.mxu0 0.0
        %1159 = vmatpush1.msra.mxu0 0.0
        %1160 = vmatprep.subr.mxu0 0.0
        %1161 = vmatpush1.msra.mxu0 0.0
        %1162 = vmatprep.subr.mxu0 0.0
        %1163 = vmatpush1.msra.mxu0 0.0
        %1164 = vmatprep.subr.mxu0 0.0
        %1165 = vmatpush1.msra.mxu0 0.0
        %1166 = vmatprep.subr.mxu0 0.0
        %1167 = vmatpush1.msra.mxu0 0.0
        %1168 = vmatprep.subr.mxu0 0.0
        %1169 = vmatpush1.msra.mxu0 0.0
        %1170 = vmatprep.subr.mxu0 0.0
        %1171 = vmatpush1.msra.mxu0 0.0
        %1172 = vmatprep.mubr.f32.mxu0 0.0
        %1173 = vmatmul.mubr.f32.gmra.mrb[0].mxu0 %v1106
        %v1174 = vpop.f32.mrb[0].mxu0
        %v1175 = vadd.f32 %v1083, %v1174
        %v1176 = vpop.f32.mrb[0].mxu0
        %1177 = vdwg.mxu0
        %1178 = vst [vmem:[%s391] sm:$0xff] %v1175
        %s1179 = sand.u32 %s253, 1
        %s1180 = scalar_lea.sflag [#allocation3], %s1179
        %s1181 = sand.u32 %s253, 1
        %s1182 = smul.addr %s1181, 8
        %s1183 = scalar_lea.vmem [#allocation2], %s1182
        // Predicated region
        $region57: #{cfconv_pallas.1} parent=55 // pred_check
          %p1184 = pneg %p263
        $region58: #{cfconv_pallas.1} parent=55 // pred_check_branch
          %1186 = sbr.rel (%p1184) target = $region60
        $region59: #{cfconv_pallas.1} parent=55 // pred_region
          %s1188 = ssub.s32 128, 128
          %1189 = vsyncadd %s1180, %s1188
          %s1190 = sadd.s32 %s28, %s27
          %s1191 = smul.addr %s1190, 128
          %s1192 = scalar_lea.hbm %s9, %s1191
          %s1194 = sshll.u32 %s1183, 4
          %s1195 = int_to_ptr.vmem [resolvable:$true] %s1194
          %1197 = dma.vmem_to_hbm [thread:$0]  %s1195, 128, %s1192, %s1180
        $region60: #{cfconv_pallas.1} parent=55 // pred_fallthru
          _
      $region56: #{cfconv_pallas.1} parent=5 // pred_fallthru
        _
      %p1198 = scmp.le.s32.totalorder 2, %s18
      // Predicated region
      $region61: #{cfconv_pallas.1} parent=5 // pred_check
        %p1199 = pneg %p1198
      $region62: #{cfconv_pallas.1} parent=5 // pred_check_branch
        %1201 = sbr.rel (%p1199) target = $region64
      $region63: #{cfconv_pallas.1} parent=5 // pred_region
        %s1202 = ssub.s32 %s18, 2
        // Predicated region
        $region65: #{cfconv_pallas.1} parent=63 // pred_check
          %p1203 = pneg %p269
        $region66: #{cfconv_pallas.1} parent=63 // pred_check_branch
          %1205 = sbr.rel (%p1203) target = $region68
        $region67: #{cfconv_pallas.1} parent=63 // pred_region
          %s1206 = sand.u32 %s254, 1
          %s1207 = scalar_lea.sflag [#allocation3], %s1206
          %s1208 = sand.u32 %s254, 1
          %s1209 = smul.addr %s1208, 8
          %s1210 = scalar_lea.vmem [#allocation2], %s1209
          %1211 = dma.done %s1207, 128
        $region68: #{cfconv_pallas.1} parent=63 // pred_fallthru
          _
      $region64: #{cfconv_pallas.1} parent=5 // pred_fallthru
        _
    $region6: #{cfconv_pallas.1} parent=1 // loop_footer
      %s22 = sadd.s32 1, %s18
    $region7: #{cfconv_pallas.1} parent=1 // loop_footer_branch
      %17 = sbr.rel target = $region3
    $region8: #{cfconv_pallas.1} parent=1 // loop_exit
      _
    %1212 = vsyncpa [#allocation3], 1
    %s1213 = scalar_lea.sflag [#allocation3], 1
    %1214 = vsyncpa %s1213, 1

</llo_original>
